<compile_context>
chip_gen: v7x
topology: tpu7x:2x2x1
jax: 0.10.0
libtpu: 0.0.40
codegen_flags: <defaults>
</compile_context>

<pallas_src>
import math
import functools

import jax
import jax.numpy as jnp
from jax.experimental import pallas as pl
from jax.experimental.pallas import tpu as pltpu

# ---------------- configuration (small, consistent with the module) ----------------
Z_DIM = 32
C_DIM = 8
W_DIM = 32
NUM_WS = 4
NUM_LAYERS = 8
LR_MULTIPLIER = 0.01
EPS = 1e-8
LRELU_SLOPE = 0.2
LRELU_GAIN = math.sqrt(2.0)

EMBED_FEATURES = W_DIM          # embed_features defaults to w_dim (c_dim > 0)
LAYER_FEATURES = W_DIM          # layer_features defaults to w_dim
NUM_MID = NUM_LAYERS - 1        # layers 1..7 all have shape [W_DIM, W_DIM]

MAX_BATCH_TILE = 1024           # rows per grid step (multiple of 8 for f32 sublanes)


def _lrelu(x):
    return jnp.where(x >= 0, x, LRELU_SLOPE * x) * LRELU_GAIN


def mapping_kernel(num_ws,
                   z_ref, c_ref,
                   we_ref,                     # embed weight (transposed, bf16): [C_DIM, EMBED]
                   wstack_ref,                 # bf16 [2+NUM_MID, 32, 32]: [w0z_t, w0y_t, fc1..fc7]
                   bstack_ref,                 # f32  [2+NUM_MID, 1, 32]:  [embed_b, b0, fc1..fc7]
                   out_ref):                   # f32  [TB, num_ws * W_DIM] (lane-dense)
    # ---- input block: normalize_2nd_moment(z) in f32 ----
    z = z_ref[...].astype(jnp.float32)
    x = z * jax.lax.rsqrt(jnp.mean(z * z, axis=1, keepdims=True) + EPS)

    # ---- embed(c): bf16 matmul, f32 accumulate + bias, then normalize (f32) ----
    c = c_ref[...].astype(jnp.bfloat16)
    y = jnp.dot(c, we_ref[...], preferred_element_type=jnp.float32) + bstack_ref[0]
    y = y * jax.lax.rsqrt(jnp.mean(y * y, axis=1, keepdims=True) + EPS)

    # ---- fc0 on concat([x, y]) expressed as split matmul (avoids lane concat) ----
    h = (jnp.dot(x.astype(jnp.bfloat16), wstack_ref[0],
                 preferred_element_type=jnp.float32)
         + jnp.dot(y.astype(jnp.bfloat16), wstack_ref[1],
                   preferred_element_type=jnp.float32)
         + bstack_ref[1])
    h = _lrelu(h)

    # ---- fc1 .. fc{NUM_LAYERS-1}: aligned leading-axis tile loads of the stacks ----
    for i in range(NUM_MID):
        h = jnp.dot(h.astype(jnp.bfloat16), wstack_ref[2 + i],
                    preferred_element_type=jnp.float32) + bstack_ref[2 + i]
        h = _lrelu(h)

    # ---- fused num_ws broadcast: lane-dense [TB, num_ws * W_DIM] write ----
    # TODO(synk): emit bf16 here for v5e bandwidth if the downstream consumer tolerates it.
    out_ref[...] = jnp.tile(h, (1, num_ws))


def init_params(key):
    """Deterministic synthetic parameters matching the module's __init__ shapes."""
    ks = jax.random.split(key, 2 * (1 + NUM_LAYERS))
    params = {}
    # embed: FullyConnectedLayer(c_dim, embed_features), activation='linear', lr_mult=1
    params["embed_w"] = jax.random.normal(ks[0], (EMBED_FEATURES, C_DIM), jnp.float32)
    params["embed_b"] = 0.1 * jax.random.normal(ks[1], (EMBED_FEATURES,), jnp.float32)
    # fc0..fc7: in = [Z+EMBED, W, ..., W], out = [W]*8, activation='lrelu', lr_mult=0.01
    feats = [Z_DIM + EMBED_FEATURES] + [LAYER_FEATURES] * (NUM_LAYERS - 1) + [W_DIM]
    for idx in range(NUM_LAYERS):
        fin, fout = feats[idx], feats[idx + 1]
        params[f"fc{idx}_w"] = jax.random.normal(ks[2 + 2 * idx], (fout, fin), jnp.float32)
        params[f"fc{idx}_b"] = 0.1 * jax.random.normal(ks[3 + 2 * idx], (fout,), jnp.float32)
    return params


def fold_params(params):
    """One-time glue: fold FullyConnectedLayer gains, transpose to [in, out],
    stack weights/biases along a leading axis, cast matmul weights to bf16.
    Call once at model init, NOT per forward."""
    # embed: lr_multiplier = 1 -> weight_gain = 1/sqrt(c_dim), bias_gain = 1
    we_t = (params["embed_w"] * (1.0 / math.sqrt(C_DIM))).T           # [C_DIM, EMBED]
    be = params["embed_b"].reshape(1, EMBED_FEATURES)

    fin0 = Z_DIM + EMBED_FEATURES
    wg0 = LR_MULTIPLIER / math.sqrt(fin0)
    w0 = params["fc0_w"] * wg0                                        # [LF, Z+EMBED]
    w0z_t = w0[:, :Z_DIM].T                                           # [Z, LF]
    w0y_t = w0[:, Z_DIM:].T                                           # [EMBED, LF]
    b0 = (params["fc0_b"] * LR_MULTIPLIER).reshape(1, LAYER_FEATURES)

    wg_mid = LR_MULTIPLIER / math.sqrt(LAYER_FEATURES)
    mid_ws = [(params[f"fc{i}_w"] * wg_mid).T for i in range(1, NUM_LAYERS)]
    mid_bs = [(params[f"fc{i}_b"] * LR_MULTIPLIER).reshape(1, W_DIM)
              for i in range(1, NUM_LAYERS)]

    # Leading-axis stacks: each layer reads an aligned [32,32] / [1,32] tile.
    wstack = jnp.stack([w0z_t, w0y_t] + mid_ws, axis=0).astype(jnp.bfloat16)  # [9,32,32]
    bstack = jnp.stack([be, b0] + mid_bs, axis=0).astype(jnp.float32)         # [9,1,32]
    we_t = we_t.astype(jnp.bfloat16)
    return dict(we_t=we_t, wstack=wstack, bstack=bstack)


def _round_up8(n):
    return ((n + 7) // 8) * 8


def _choose_batch_tile(batch):
    """Rows per grid step: multiple of 8 (f32 sublanes), capped at MAX_BATCH_TILE.
    For batch > 256 always use >= 2 tiles so the batch axis can be sharded across
    both TensorCores on v7x via dimension_semantics=("parallel",)."""
    if batch <= 256:
        return min(MAX_BATCH_TILE, max(8, _round_up8(batch)))
    n_tiles = max(2, -(-batch // MAX_BATCH_TILE))
    return min(MAX_BATCH_TILE, _round_up8(-(-batch // n_tiles)))


@functools.partial(jax.jit, static_argnames=("num_ws",))
def mapping_network_forward(z, c, folded, num_ws=NUM_WS):
    batch = z.shape[0]
    tb = _choose_batch_tile(batch)
    grid = (pl.cdiv(batch, tb),)
    out_lanes = num_ws * W_DIM

    we_t, wstack, bstack = folded["we_t"], folded["wstack"], folded["bstack"]

    # Advisory cost hint for XLA's scheduler (this custom call is cheap).
    flops = 2 * batch * (C_DIM * EMBED_FEATURES
                         + (Z_DIM + EMBED_FEATURES) * LAYER_FEATURES
                         + NUM_MID * LAYER_FEATURES * W_DIM)
    bytes_accessed = (batch * ((Z_DIM + C_DIM) * 4 + out_lanes * 4)
                      + we_t.size * 2 + wstack.size * 2 + bstack.size * 4)

    # NOTE: no jnp.pad — the last (ragged) batch block reads undefined rows past
    # the end of z/c; every op is row-independent and the masked writeback drops
    # those rows, so this is safe.  Do not add row-coupled ops to the kernel.
    w_slab = pl.pallas_call(
        functools.partial(mapping_kernel, num_ws),
        out_shape=jax.ShapeDtypeStruct((batch, out_lanes), jnp.float32),
        grid=grid,
        in_specs=[
            pl.BlockSpec((tb, Z_DIM), lambda i: (i, 0)),       # z: tiled over batch
            pl.BlockSpec((tb, C_DIM), lambda i: (i, 0)),       # c: tiled over batch
            pl.BlockSpec(we_t.shape, lambda i: (0, 0)),        # weights: resident across steps
            pl.BlockSpec(wstack.shape, lambda i: (0, 0, 0)),
            pl.BlockSpec(bstack.shape, lambda i: (0, 0, 0)),
        ],
        out_specs=pl.BlockSpec((tb, out_lanes), lambda i: (i, 0)),
        compiler_params=pltpu.CompilerParams(
            dimension_semantics=("parallel",)),                # v7x: shard batch tiles over 2 TCs
        cost_estimate=pl.CostEstimate(flops=flops,
                                      transcendentals=2 * batch,
                                      bytes_accessed=bytes_accessed),
    )(z, c, we_t, wstack, bstack)

    # Lane-dense slab [B, num_ws*W] already contains the num_ws broadcast; just reshape.
    return w_slab.reshape(batch, num_ws, W_DIM)


def reference_forward(z, c, params):
    """Pure-JAX f32 reference mirroring the PyTorch forward (inference path)."""
    def norm2(x):
        return x * jax.lax.rsqrt(jnp.mean(x * x, axis=1, keepdims=True) + EPS)

    x = norm2(z.astype(jnp.float32))
    we = params["embed_w"] * (1.0 / math.sqrt(C_DIM))
    y = c.astype(jnp.float32) @ we.T + params["embed_b"]
    y = norm2(y)
    h = jnp.concatenate([x, y], axis=1)

    feats = [Z_DIM + EMBED_FEATURES] + [LAYER_FEATURES] * (NUM_LAYERS - 1) + [W_DIM]
    for idx in range(NUM_LAYERS):
        fin = feats[idx]
        w_eff = params[f"fc{idx}_w"] * (LR_MULTIPLIER / math.sqrt(fin))
        b_eff = params[f"fc{idx}_b"] * LR_MULTIPLIER
        h = h @ w_eff.T + b_eff
        h = jnp.where(h >= 0, h, LRELU_SLOPE * h) * LRELU_GAIN
    return jnp.broadcast_to(h[:, None, :], (h.shape[0], NUM_WS, W_DIM))


if __name__ == "__main__":
    key = jax.random.PRNGKey(0)
    kz, kc, kp = jax.random.split(key, 3)

    params = init_params(kp)
    # Fold / transpose / stack / bf16-cast weights once (outside the per-call jit).
    folded = jax.tree_util.tree_map(jax.block_until_ready, fold_params(params))

    # batch=8 hits an exact tile; batch=20 exercises the ragged (unpadded) tail path.
    for batch in (8, 20):
        z = jax.random.normal(kz, (batch, Z_DIM), jnp.float32)
        c = jax.random.normal(kc, (batch, C_DIM), jnp.float32)

        out = jax.block_until_ready(mapping_network_forward(z, c, folded))
        ref = reference_forward(z, c, params)

        assert out.shape == (batch, NUM_WS, W_DIM), out.shape
        # bf16 matmul operands (f32 accumulation) -> relaxed tolerance vs f32 reference.
        err = float(jnp.max(jnp.abs(out - ref)))
        tol = 1e-4 + 2e-2 * float(jnp.max(jnp.abs(ref)))
        assert err <= tol, (err, tol)

    print("KERNEL_OK")
</pallas_src>

<mosaic_0001>
module attributes {stable_mosaic.version = 11 : i64} {
  func.func @mapping_kernel(%arg0: i32, %arg1: memref<8x32xf32, #tpu.memory_space<vmem>>, %arg2: memref<8x8xf32, #tpu.memory_space<vmem>>, %arg3: memref<8x32xbf16, #tpu.memory_space<vmem>>, %arg4: memref<9x32x32xbf16, #tpu.memory_space<vmem>>, %arg5: memref<9x1x32xf32, #tpu.memory_space<vmem>>, %arg6: memref<8x128xf32, #tpu.memory_space<vmem>>) attributes {dimension_semantics = [#tpu.dimension_semantics<parallel>], iteration_bounds = array<i64: 1>, scalar_prefetch = 0 : i64, scratch_operands = 0 : i64, tpu.core_type = #tpu.core_type<tc>, window_params = [{transform_indices = @transform_0, window_bounds = array<i64: 8, 32>}, {transform_indices = @transform_1, window_bounds = array<i64: 8, 8>}, {pipeline_mode = #tpu.pipeline_mode<synchronous>, transform_indices = @transform_2, window_bounds = array<i64: 8, 32>}, {pipeline_mode = #tpu.pipeline_mode<synchronous>, transform_indices = @transform_3, window_bounds = array<i64: 9, 32, 32>}, {pipeline_mode = #tpu.pipeline_mode<synchronous>, transform_indices = @transform_4, window_bounds = array<i64: 9, 1, 32>}, {transform_indices = @transform_5, window_bounds = array<i64: 8, 128>}]} {
    %c0 = arith.constant 0 : index
    %c0_0 = arith.constant 0 : index
    %0 = vector.load %arg1[%c0, %c0_0] : memref<8x32xf32, #tpu.memory_space<vmem>>, vector<8x32xf32>
    %1 = arith.mulf %0, %0 : vector<8x32xf32>
    %cst = arith.constant dense<0.000000e+00> : vector<8xf32>
    %2 = vector.multi_reduction <add>, %1, %cst [1] : vector<8x32xf32> to vector<8xf32>
    %3 = vector.shape_cast %2 : vector<8xf32> to vector<8x1xf32>
    %cst_1 = arith.constant 3.200000e+01 : f32
    %4 = vector.broadcast %cst_1 : f32 to vector<8x1xf32>
    %5 = arith.divf %3, %4 : vector<8x1xf32>
    %cst_2 = arith.constant 9.99999993E-9 : f32
    %6 = vector.broadcast %cst_2 : f32 to vector<8x1xf32>
    %7 = arith.addf %5, %6 : vector<8x1xf32>
    %8 = math.rsqrt %7 : vector<8x1xf32>
    %9 = vector.broadcast %8 : vector<8x1xf32> to vector<8x32xf32>
    %10 = arith.mulf %0, %9 : vector<8x32xf32>
    %c0_3 = arith.constant 0 : index
    %c0_4 = arith.constant 0 : index
    %11 = vector.load %arg2[%c0_3, %c0_4] : memref<8x8xf32, #tpu.memory_space<vmem>>, vector<8x8xf32>
    %12 = arith.truncf %11 : vector<8x8xf32> to vector<8x8xbf16>
    %c0_5 = arith.constant 0 : index
    %c0_6 = arith.constant 0 : index
    %13 = vector.load %arg3[%c0_5, %c0_6] : memref<8x32xbf16, #tpu.memory_space<vmem>>, vector<8x32xbf16>
    %cst_7 = arith.constant dense<0.000000e+00> : vector<8x32xf32>
    %14 = tpu.matmul %12, %13, %cst_7 {dimension_numbers = #tpu.dot_dimension_numbers<[1], [0], [0], [1], [0, 0, 1, 1], [], []>} : vector<8x8xbf16>, vector<8x32xbf16>, vector<8x32xf32> -> vector<8x32xf32>
    %c0_8 = arith.constant 0 : index
    %c0_9 = arith.constant 0 : index
    %c0_10 = arith.constant 0 : index
    %15 = vector.load %arg5[%c0_8, %c0_9, %c0_10] : memref<9x1x32xf32, #tpu.memory_space<vmem>>, vector<1x1x32xf32>
    %16 = vector.shape_cast %15 : vector<1x1x32xf32> to vector<1x32xf32>
    %17 = vector.broadcast %16 : vector<1x32xf32> to vector<8x32xf32>
    %18 = arith.addf %14, %17 : vector<8x32xf32>
    %19 = arith.mulf %18, %18 : vector<8x32xf32>
    %cst_11 = arith.constant dense<0.000000e+00> : vector<8xf32>
    %20 = vector.multi_reduction <add>, %19, %cst_11 [1] : vector<8x32xf32> to vector<8xf32>
    %21 = vector.shape_cast %20 : vector<8xf32> to vector<8x1xf32>
    %cst_12 = arith.constant 3.200000e+01 : f32
    %22 = vector.broadcast %cst_12 : f32 to vector<8x1xf32>
    %23 = arith.divf %21, %22 : vector<8x1xf32>
    %cst_13 = arith.constant 9.99999993E-9 : f32
    %24 = vector.broadcast %cst_13 : f32 to vector<8x1xf32>
    %25 = arith.addf %23, %24 : vector<8x1xf32>
    %26 = math.rsqrt %25 : vector<8x1xf32>
    %27 = vector.broadcast %26 : vector<8x1xf32> to vector<8x32xf32>
    %28 = arith.mulf %18, %27 : vector<8x32xf32>
    %29 = arith.truncf %10 : vector<8x32xf32> to vector<8x32xbf16>
    %c0_14 = arith.constant 0 : index
    %c0_15 = arith.constant 0 : index
    %c0_16 = arith.constant 0 : index
    %30 = vector.load %arg4[%c0_14, %c0_15, %c0_16] : memref<9x32x32xbf16, #tpu.memory_space<vmem>>, vector<1x32x32xbf16>
    %31 = vector.shape_cast %30 : vector<1x32x32xbf16> to vector<32x32xbf16>
    %cst_17 = arith.constant dense<0.000000e+00> : vector<8x32xf32>
    %32 = tpu.matmul %29, %31, %cst_17 {dimension_numbers = #tpu.dot_dimension_numbers<[1], [0], [0], [1], [0, 0, 1, 1], [], []>} : vector<8x32xbf16>, vector<32x32xbf16>, vector<8x32xf32> -> vector<8x32xf32>
    %33 = arith.truncf %28 : vector<8x32xf32> to vector<8x32xbf16>
    %c1 = arith.constant 1 : index
    %c0_18 = arith.constant 0 : index
    %c0_19 = arith.constant 0 : index
    %34 = vector.load %arg4[%c1, %c0_18, %c0_19] : memref<9x32x32xbf16, #tpu.memory_space<vmem>>, vector<1x32x32xbf16>
    %35 = vector.shape_cast %34 : vector<1x32x32xbf16> to vector<32x32xbf16>
    %cst_20 = arith.constant dense<0.000000e+00> : vector<8x32xf32>
    %36 = tpu.matmul %33, %35, %cst_20 {dimension_numbers = #tpu.dot_dimension_numbers<[1], [0], [0], [1], [0, 0, 1, 1], [], []>} : vector<8x32xbf16>, vector<32x32xbf16>, vector<8x32xf32> -> vector<8x32xf32>
    %37 = arith.addf %32, %36 : vector<8x32xf32>
    %c1_21 = arith.constant 1 : index
    %c0_22 = arith.constant 0 : index
    %c0_23 = arith.constant 0 : index
    %38 = vector.load %arg5[%c1_21, %c0_22, %c0_23] : memref<9x1x32xf32, #tpu.memory_space<vmem>>, vector<1x1x32xf32>
    %39 = vector.shape_cast %38 : vector<1x1x32xf32> to vector<1x32xf32>
    %40 = vector.broadcast %39 : vector<1x32xf32> to vector<8x32xf32>
    %41 = arith.addf %37, %40 : vector<8x32xf32>
    %cst_24 = arith.constant 0.000000e+00 : f32
    %42 = vector.broadcast %cst_24 : f32 to vector<8x32xf32>
    %43 = arith.cmpf oge, %41, %42 : vector<8x32xf32>
    %cst_25 = arith.constant 2.000000e-01 : f32
    %44 = vector.broadcast %cst_25 : f32 to vector<8x32xf32>
    %45 = arith.mulf %44, %41 : vector<8x32xf32>
    %46 = arith.select %43, %41, %45 : vector<8x32xi1>, vector<8x32xf32>
    %cst_26 = arith.constant 1.41421354 : f32
    %47 = vector.broadcast %cst_26 : f32 to vector<8x32xf32>
    %48 = arith.mulf %46, %47 : vector<8x32xf32>
    %49 = arith.truncf %48 : vector<8x32xf32> to vector<8x32xbf16>
    %c2 = arith.constant 2 : index
    %c0_27 = arith.constant 0 : index
    %c0_28 = arith.constant 0 : index
    %50 = vector.load %arg4[%c2, %c0_27, %c0_28] : memref<9x32x32xbf16, #tpu.memory_space<vmem>>, vector<1x32x32xbf16>
    %51 = vector.shape_cast %50 : vector<1x32x32xbf16> to vector<32x32xbf16>
    %cst_29 = arith.constant dense<0.000000e+00> : vector<8x32xf32>
    %52 = tpu.matmul %49, %51, %cst_29 {dimension_numbers = #tpu.dot_dimension_numbers<[1], [0], [0], [1], [0, 0, 1, 1], [], []>} : vector<8x32xbf16>, vector<32x32xbf16>, vector<8x32xf32> -> vector<8x32xf32>
    %c2_30 = arith.constant 2 : index
    %c0_31 = arith.constant 0 : index
    %c0_32 = arith.constant 0 : index
    %53 = vector.load %arg5[%c2_30, %c0_31, %c0_32] : memref<9x1x32xf32, #tpu.memory_space<vmem>>, vector<1x1x32xf32>
    %54 = vector.shape_cast %53 : vector<1x1x32xf32> to vector<1x32xf32>
    %55 = vector.broadcast %54 : vector<1x32xf32> to vector<8x32xf32>
    %56 = arith.addf %52, %55 : vector<8x32xf32>
    %cst_33 = arith.constant 0.000000e+00 : f32
    %57 = vector.broadcast %cst_33 : f32 to vector<8x32xf32>
    %58 = arith.cmpf oge, %56, %57 : vector<8x32xf32>
    %cst_34 = arith.constant 2.000000e-01 : f32
    %59 = vector.broadcast %cst_34 : f32 to vector<8x32xf32>
    %60 = arith.mulf %59, %56 : vector<8x32xf32>
    %61 = arith.select %58, %56, %60 : vector<8x32xi1>, vector<8x32xf32>
    %cst_35 = arith.constant 1.41421354 : f32
    %62 = vector.broadcast %cst_35 : f32 to vector<8x32xf32>
    %63 = arith.mulf %61, %62 : vector<8x32xf32>
    %64 = arith.truncf %63 : vector<8x32xf32> to vector<8x32xbf16>
    %c3 = arith.constant 3 : index
    %c0_36 = arith.constant 0 : index
    %c0_37 = arith.constant 0 : index
    %65 = vector.load %arg4[%c3, %c0_36, %c0_37] : memref<9x32x32xbf16, #tpu.memory_space<vmem>>, vector<1x32x32xbf16>
    %66 = vector.shape_cast %65 : vector<1x32x32xbf16> to vector<32x32xbf16>
    %cst_38 = arith.constant dense<0.000000e+00> : vector<8x32xf32>
    %67 = tpu.matmul %64, %66, %cst_38 {dimension_numbers = #tpu.dot_dimension_numbers<[1], [0], [0], [1], [0, 0, 1, 1], [], []>} : vector<8x32xbf16>, vector<32x32xbf16>, vector<8x32xf32> -> vector<8x32xf32>
    %c3_39 = arith.constant 3 : index
    %c0_40 = arith.constant 0 : index
    %c0_41 = arith.constant 0 : index
    %68 = vector.load %arg5[%c3_39, %c0_40, %c0_41] : memref<9x1x32xf32, #tpu.memory_space<vmem>>, vector<1x1x32xf32>
    %69 = vector.shape_cast %68 : vector<1x1x32xf32> to vector<1x32xf32>
    %70 = vector.broadcast %69 : vector<1x32xf32> to vector<8x32xf32>
    %71 = arith.addf %67, %70 : vector<8x32xf32>
    %cst_42 = arith.constant 0.000000e+00 : f32
    %72 = vector.broadcast %cst_42 : f32 to vector<8x32xf32>
    %73 = arith.cmpf oge, %71, %72 : vector<8x32xf32>
    %cst_43 = arith.constant 2.000000e-01 : f32
    %74 = vector.broadcast %cst_43 : f32 to vector<8x32xf32>
    %75 = arith.mulf %74, %71 : vector<8x32xf32>
    %76 = arith.select %73, %71, %75 : vector<8x32xi1>, vector<8x32xf32>
    %cst_44 = arith.constant 1.41421354 : f32
    %77 = vector.broadcast %cst_44 : f32 to vector<8x32xf32>
    %78 = arith.mulf %76, %77 : vector<8x32xf32>
    %79 = arith.truncf %78 : vector<8x32xf32> to vector<8x32xbf16>
    %c4 = arith.constant 4 : index
    %c0_45 = arith.constant 0 : index
    %c0_46 = arith.constant 0 : index
    %80 = vector.load %arg4[%c4, %c0_45, %c0_46] : memref<9x32x32xbf16, #tpu.memory_space<vmem>>, vector<1x32x32xbf16>
    %81 = vector.shape_cast %80 : vector<1x32x32xbf16> to vector<32x32xbf16>
    %cst_47 = arith.constant dense<0.000000e+00> : vector<8x32xf32>
    %82 = tpu.matmul %79, %81, %cst_47 {dimension_numbers = #tpu.dot_dimension_numbers<[1], [0], [0], [1], [0, 0, 1, 1], [], []>} : vector<8x32xbf16>, vector<32x32xbf16>, vector<8x32xf32> -> vector<8x32xf32>
    %c4_48 = arith.constant 4 : index
    %c0_49 = arith.constant 0 : index
    %c0_50 = arith.constant 0 : index
    %83 = vector.load %arg5[%c4_48, %c0_49, %c0_50] : memref<9x1x32xf32, #tpu.memory_space<vmem>>, vector<1x1x32xf32>
    %84 = vector.shape_cast %83 : vector<1x1x32xf32> to vector<1x32xf32>
    %85 = vector.broadcast %84 : vector<1x32xf32> to vector<8x32xf32>
    %86 = arith.addf %82, %85 : vector<8x32xf32>
    %cst_51 = arith.constant 0.000000e+00 : f32
    %87 = vector.broadcast %cst_51 : f32 to vector<8x32xf32>
    %88 = arith.cmpf oge, %86, %87 : vector<8x32xf32>
    %cst_52 = arith.constant 2.000000e-01 : f32
    %89 = vector.broadcast %cst_52 : f32 to vector<8x32xf32>
    %90 = arith.mulf %89, %86 : vector<8x32xf32>
    %91 = arith.select %88, %86, %90 : vector<8x32xi1>, vector<8x32xf32>
    %cst_53 = arith.constant 1.41421354 : f32
    %92 = vector.broadcast %cst_53 : f32 to vector<8x32xf32>
    %93 = arith.mulf %91, %92 : vector<8x32xf32>
    %94 = arith.truncf %93 : vector<8x32xf32> to vector<8x32xbf16>
    %c5 = arith.constant 5 : index
    %c0_54 = arith.constant 0 : index
    %c0_55 = arith.constant 0 : index
    %95 = vector.load %arg4[%c5, %c0_54, %c0_55] : memref<9x32x32xbf16, #tpu.memory_space<vmem>>, vector<1x32x32xbf16>
    %96 = vector.shape_cast %95 : vector<1x32x32xbf16> to vector<32x32xbf16>
    %cst_56 = arith.constant dense<0.000000e+00> : vector<8x32xf32>
    %97 = tpu.matmul %94, %96, %cst_56 {dimension_numbers = #tpu.dot_dimension_numbers<[1], [0], [0], [1], [0, 0, 1, 1], [], []>} : vector<8x32xbf16>, vector<32x32xbf16>, vector<8x32xf32> -> vector<8x32xf32>
    %c5_57 = arith.constant 5 : index
    %c0_58 = arith.constant 0 : index
    %c0_59 = arith.constant 0 : index
    %98 = vector.load %arg5[%c5_57, %c0_58, %c0_59] : memref<9x1x32xf32, #tpu.memory_space<vmem>>, vector<1x1x32xf32>
    %99 = vector.shape_cast %98 : vector<1x1x32xf32> to vector<1x32xf32>
    %100 = vector.broadcast %99 : vector<1x32xf32> to vector<8x32xf32>
    %101 = arith.addf %97, %100 : vector<8x32xf32>
    %cst_60 = arith.constant 0.000000e+00 : f32
    %102 = vector.broadcast %cst_60 : f32 to vector<8x32xf32>
    %103 = arith.cmpf oge, %101, %102 : vector<8x32xf32>
    %cst_61 = arith.constant 2.000000e-01 : f32
    %104 = vector.broadcast %cst_61 : f32 to vector<8x32xf32>
    %105 = arith.mulf %104, %101 : vector<8x32xf32>
    %106 = arith.select %103, %101, %105 : vector<8x32xi1>, vector<8x32xf32>
    %cst_62 = arith.constant 1.41421354 : f32
    %107 = vector.broadcast %cst_62 : f32 to vector<8x32xf32>
    %108 = arith.mulf %106, %107 : vector<8x32xf32>
    %109 = arith.truncf %108 : vector<8x32xf32> to vector<8x32xbf16>
    %c6 = arith.constant 6 : index
    %c0_63 = arith.constant 0 : index
    %c0_64 = arith.constant 0 : index
    %110 = vector.load %arg4[%c6, %c0_63, %c0_64] : memref<9x32x32xbf16, #tpu.memory_space<vmem>>, vector<1x32x32xbf16>
    %111 = vector.shape_cast %110 : vector<1x32x32xbf16> to vector<32x32xbf16>
    %cst_65 = arith.constant dense<0.000000e+00> : vector<8x32xf32>
    %112 = tpu.matmul %109, %111, %cst_65 {dimension_numbers = #tpu.dot_dimension_numbers<[1], [0], [0], [1], [0, 0, 1, 1], [], []>} : vector<8x32xbf16>, vector<32x32xbf16>, vector<8x32xf32> -> vector<8x32xf32>
    %c6_66 = arith.constant 6 : index
    %c0_67 = arith.constant 0 : index
    %c0_68 = arith.constant 0 : index
    %113 = vector.load %arg5[%c6_66, %c0_67, %c0_68] : memref<9x1x32xf32, #tpu.memory_space<vmem>>, vector<1x1x32xf32>
    %114 = vector.shape_cast %113 : vector<1x1x32xf32> to vector<1x32xf32>
    %115 = vector.broadcast %114 : vector<1x32xf32> to vector<8x32xf32>
    %116 = arith.addf %112, %115 : vector<8x32xf32>
    %cst_69 = arith.constant 0.000000e+00 : f32
    %117 = vector.broadcast %cst_69 : f32 to vector<8x32xf32>
    %118 = arith.cmpf oge, %116, %117 : vector<8x32xf32>
    %cst_70 = arith.constant 2.000000e-01 : f32
    %119 = vector.broadcast %cst_70 : f32 to vector<8x32xf32>
    %120 = arith.mulf %119, %116 : vector<8x32xf32>
    %121 = arith.select %118, %116, %120 : vector<8x32xi1>, vector<8x32xf32>
    %cst_71 = arith.constant 1.41421354 : f32
    %122 = vector.broadcast %cst_71 : f32 to vector<8x32xf32>
    %123 = arith.mulf %121, %122 : vector<8x32xf32>
    %124 = arith.truncf %123 : vector<8x32xf32> to vector<8x32xbf16>
    %c7 = arith.constant 7 : index
    %c0_72 = arith.constant 0 : index
    %c0_73 = arith.constant 0 : index
    %125 = vector.load %arg4[%c7, %c0_72, %c0_73] : memref<9x32x32xbf16, #tpu.memory_space<vmem>>, vector<1x32x32xbf16>
    %126 = vector.shape_cast %125 : vector<1x32x32xbf16> to vector<32x32xbf16>
    %cst_74 = arith.constant dense<0.000000e+00> : vector<8x32xf32>
    %127 = tpu.matmul %124, %126, %cst_74 {dimension_numbers = #tpu.dot_dimension_numbers<[1], [0], [0], [1], [0, 0, 1, 1], [], []>} : vector<8x32xbf16>, vector<32x32xbf16>, vector<8x32xf32> -> vector<8x32xf32>
    %c7_75 = arith.constant 7 : index
    %c0_76 = arith.constant 0 : index
    %c0_77 = arith.constant 0 : index
    %128 = vector.load %arg5[%c7_75, %c0_76, %c0_77] : memref<9x1x32xf32, #tpu.memory_space<vmem>>, vector<1x1x32xf32>
    %129 = vector.shape_cast %128 : vector<1x1x32xf32> to vector<1x32xf32>
    %130 = vector.broadcast %129 : vector<1x32xf32> to vector<8x32xf32>
    %131 = arith.addf %127, %130 : vector<8x32xf32>
    %cst_78 = arith.constant 0.000000e+00 : f32
    %132 = vector.broadcast %cst_78 : f32 to vector<8x32xf32>
    %133 = arith.cmpf oge, %131, %132 : vector<8x32xf32>
    %cst_79 = arith.constant 2.000000e-01 : f32
    %134 = vector.broadcast %cst_79 : f32 to vector<8x32xf32>
    %135 = arith.mulf %134, %131 : vector<8x32xf32>
    %136 = arith.select %133, %131, %135 : vector<8x32xi1>, vector<8x32xf32>
    %cst_80 = arith.constant 1.41421354 : f32
    %137 = vector.broadcast %cst_80 : f32 to vector<8x32xf32>
    %138 = arith.mulf %136, %137 : vector<8x32xf32>
    %139 = arith.truncf %138 : vector<8x32xf32> to vector<8x32xbf16>
    %c8 = arith.constant 8 : index
    %c0_81 = arith.constant 0 : index
    %c0_82 = arith.constant 0 : index
    %140 = vector.load %arg4[%c8, %c0_81, %c0_82] : memref<9x32x32xbf16, #tpu.memory_space<vmem>>, vector<1x32x32xbf16>
    %141 = vector.shape_cast %140 : vector<1x32x32xbf16> to vector<32x32xbf16>
    %cst_83 = arith.constant dense<0.000000e+00> : vector<8x32xf32>
    %142 = tpu.matmul %139, %141, %cst_83 {dimension_numbers = #tpu.dot_dimension_numbers<[1], [0], [0], [1], [0, 0, 1, 1], [], []>} : vector<8x32xbf16>, vector<32x32xbf16>, vector<8x32xf32> -> vector<8x32xf32>
    %c8_84 = arith.constant 8 : index
    %c0_85 = arith.constant 0 : index
    %c0_86 = arith.constant 0 : index
    %143 = vector.load %arg5[%c8_84, %c0_85, %c0_86] : memref<9x1x32xf32, #tpu.memory_space<vmem>>, vector<1x1x32xf32>
    %144 = vector.shape_cast %143 : vector<1x1x32xf32> to vector<1x32xf32>
    %145 = vector.broadcast %144 : vector<1x32xf32> to vector<8x32xf32>
    %146 = arith.addf %142, %145 : vector<8x32xf32>
    %cst_87 = arith.constant 0.000000e+00 : f32
    %147 = vector.broadcast %cst_87 : f32 to vector<8x32xf32>
    %148 = arith.cmpf oge, %146, %147 : vector<8x32xf32>
    %cst_88 = arith.constant 2.000000e-01 : f32
    %149 = vector.broadcast %cst_88 : f32 to vector<8x32xf32>
    %150 = arith.mulf %149, %146 : vector<8x32xf32>
    %151 = arith.select %148, %146, %150 : vector<8x32xi1>, vector<8x32xf32>
    %cst_89 = arith.constant 1.41421354 : f32
    %152 = vector.broadcast %cst_89 : f32 to vector<8x32xf32>
    %153 = arith.mulf %151, %152 : vector<8x32xf32>
    %154 = tpu.concatenate %153, %153, %153, %153 in 1 : vector<8x32xf32>, vector<8x32xf32>, vector<8x32xf32>, vector<8x32xf32> -> vector<8x128xf32>
    %c0_90 = arith.constant 0 : index
    %c0_91 = arith.constant 0 : index
    %155 = vector.load %arg6[%c0_90, %c0_91] : memref<8x128xf32, #tpu.memory_space<vmem>>, vector<8x128xf32>
    tpu.vector_store %arg6[%c0_90, %c0_91], %154 {strides = array<i32>} : memref<8x128xf32, #tpu.memory_space<vmem>>, vector<8x128xf32>,
    return
  }
  func.func @transform_0(%arg0: i32) -> (i32, i32) {
    %c0_i32 = arith.constant 0 : i32
    %c0_i32_0 = arith.constant 0 : i32
    return %arg0, %c0_i32 : i32, i32
  }
  func.func @transform_1(%arg0: i32) -> (i32, i32) {
    %c0_i32 = arith.constant 0 : i32
    %c0_i32_0 = arith.constant 0 : i32
    return %arg0, %c0_i32 : i32, i32
  }
  func.func @transform_2(%arg0: i32) -> (i32, i32) {
    %c0_i32 = arith.constant 0 : i32
    %c0_i32_0 = arith.constant 0 : i32
    %c0_i32_1 = arith.constant 0 : i32
    return %c0_i32, %c0_i32_0 : i32, i32
  }
  func.func @transform_3(%arg0: i32) -> (i32, i32, i32) {
    %c0_i32 = arith.constant 0 : i32
    %c0_i32_0 = arith.constant 0 : i32
    %c0_i32_1 = arith.constant 0 : i32
    %c0_i32_2 = arith.constant 0 : i32
    return %c0_i32, %c0_i32_0, %c0_i32_1 : i32, i32, i32
  }
  func.func @transform_4(%arg0: i32) -> (i32, i32, i32) {
    %c0_i32 = arith.constant 0 : i32
    %c0_i32_0 = arith.constant 0 : i32
    %c0_i32_1 = arith.constant 0 : i32
    %c0_i32_2 = arith.constant 0 : i32
    return %c0_i32, %c0_i32_0, %c0_i32_1 : i32, i32, i32
  }
  func.func @transform_5(%arg0: i32) -> (i32, i32) {
    %c0_i32 = arith.constant 0 : i32
    %c0_i32_0 = arith.constant 0 : i32
    return %arg0, %c0_i32 : i32, i32
  }
}

</mosaic_0001>

<llo_original>
// kernel: mapping_network_forward.1
$region0: #{mapping_network_forward.1}
  #allocation0 [shape = 'u32[]', space=smem, size = 0x4, offset = 0x4, fixed_abs, tag = 'smem constant byte address 0x4 - core index']
  #allocation1 [shape = 'u32[144,128]{1,0:T(1,128)}', space=vmem, size = 0x12000, scoped, tag = 'internal scratch']
  %s0 = inlined_call_operand.hbm [shape: f32[8,32], index: 0, kind: input, shape index: {}]
  %s1 = inlined_call_operand.hbm [shape: f32[8,8], index: 1, kind: input, shape index: {}]
  %s2 = inlined_call_operand.vmem [shape: bf16[8,32], index: 2, kind: input, shape index: {}]
  %s3 = inlined_call_operand.hbm [shape: bf16[9,32,32], index: 3, kind: input, shape index: {}]
  %s4 = inlined_call_operand.hbm [shape: f32[9,1,32], index: 4, kind: input, shape index: {}]
  %s5 = inlined_call_operand.vmem [shape: f32[8,128], index: 5, kind: output, shape index: {}]
  %s6 = sld [smem:[#allocation0]]
  $region46: #{mapping_network_forward.1} parent=0
    _
  %s8 = ssub.s32 1, %s6
  %s9 = scalar_select 0, %s8, %s6
  $region1: #{mapping_network_forward.1} parent=0
    #allocation2 [shape = 'u8[4096]{0}', space=vmem, size = 0x1000, scoped, tag = 'input window, operand 0, single buffered']
    #allocation3 [shape = 's32[1]{0}', space=sflag, size = 0x4, scoped, tag = 'scoped memory for mapping_network_forward.1']
    #allocation4 [shape = 'u8[4096]{0}', space=vmem, size = 0x1000, scoped, tag = 'input window, operand 1, single buffered']
    #allocation5 [shape = 's32[1]{0}', space=sflag, size = 0x4, scoped, tag = 'scoped memory for mapping_network_forward.1']
    #allocation6 [shape = 'u8[73728]{0}', space=vmem, size = 0x12000, scoped, tag = 'input window, operand 3, single buffered']
    #allocation7 [shape = 'u8[4608]{0}', space=vmem, size = 0x1400, scoped, tag = 'input window, operand 4, single buffered']
    #allocation8 [shape = 's32[1]{0}', space=sflag, size = 0x4, scoped, tag = 'scoped memory for mapping_network_forward.1']
    %10 = vsyncpa [#allocation3], 0
    %11 = vsyncpa [#allocation5], 0
    %12 = vsyncpa [#allocation8], 0
    // Predicated region
    $region2: #{mapping_network_forward.1} parent=1 // pred_check
      _
    $region3: #{mapping_network_forward.1} parent=1 // pred_check_branch
      %14 = sbr.rel (0) target = $region5
    $region4: #{mapping_network_forward.1} parent=1 // pred_region
      %s16 = ssub.s32 128, 128
      %17 = vsyncadd [#allocation3], %s16
      %s19 = sshll.u32 [#allocation2], 4
      %s20 = int_to_ptr.vmem [resolvable:$true] %s19
      %22 = dma.hbm_to_vmem [thread:$0]  %s0, 128, %s20, [#allocation3]
    $region5: #{mapping_network_forward.1} parent=1 // pred_fallthru
      _
    // Predicated region
    $region6: #{mapping_network_forward.1} parent=1 // pred_check
      _
    $region7: #{mapping_network_forward.1} parent=1 // pred_check_branch
      %24 = sbr.rel (0) target = $region9
    $region8: #{mapping_network_forward.1} parent=1 // pred_region
      %s26 = ssub.s32 128, 128
      %27 = vsyncadd [#allocation5], %s26
      %s29 = sshll.u32 [#allocation4], 4
      %s30 = int_to_ptr.vmem [resolvable:$true] %s29
      %32 = dma.hbm_to_vmem [thread:$0]  %s1, 128, %s30, [#allocation5]
    $region9: #{mapping_network_forward.1} parent=1 // pred_fallthru
      _
    // Predicated region
    $region10: #{mapping_network_forward.1} parent=1 // pred_check
      _
    $region11: #{mapping_network_forward.1} parent=1 // pred_check_branch
      %34 = sbr.rel (0) target = $region13
    $region12: #{mapping_network_forward.1} parent=1 // pred_region
      _
    $region13: #{mapping_network_forward.1} parent=1 // pred_fallthru
      _
    // Predicated region
    $region14: #{mapping_network_forward.1} parent=1 // pred_check
      _
    $region15: #{mapping_network_forward.1} parent=1 // pred_check_branch
      %36 = sbr.rel (0) target = $region17
    $region16: #{mapping_network_forward.1} parent=1 // pred_region
      %s38 = ssub.s32 2304, 2304
      %39 = vsyncadd [#allocation5], %s38
      %s40 = sshll.u32 [#allocation6], 4
      %s41 = int_to_ptr.vmem [resolvable:$true] %s40
      %46 = dma.hbm_to_vmem [thread:$0]  %s3, 2304, %s41, [#allocation5], 64, 64, 4
    $region17: #{mapping_network_forward.1} parent=1 // pred_fallthru
      _
    // Predicated region
    $region18: #{mapping_network_forward.1} parent=1 // pred_check
      _
    $region19: #{mapping_network_forward.1} parent=1 // pred_check_branch
      %48 = sbr.rel (0) target = $region21
    $region20: #{mapping_network_forward.1} parent=1 // pred_region
      %s50 = ssub.s32 144, 144
      %51 = vsyncadd [#allocation8], %s50
      %s52 = sshll.u32 [#allocation7], 4
      %s53 = int_to_ptr.vmem [resolvable:$true] %s52
      %58 = dma.hbm_to_vmem [thread:$0]  %s4, 144, %s53, [#allocation8], 16, 16, 1
    $region21: #{mapping_network_forward.1} parent=1 // pred_fallthru
      _
    // Predicated region
    $region22: #{mapping_network_forward.1} parent=1 // pred_check
      _
    $region23: #{mapping_network_forward.1} parent=1 // pred_check_branch
      %60 = sbr.rel (0) target = $region25
    $region24: #{mapping_network_forward.1} parent=1 // pred_region
      %61 = dma.done [#allocation3], 128
    $region25: #{mapping_network_forward.1} parent=1 // pred_fallthru
      _
    // Predicated region
    $region26: #{mapping_network_forward.1} parent=1 // pred_check
      _
    $region27: #{mapping_network_forward.1} parent=1 // pred_check_branch
      %63 = sbr.rel (0) target = $region29
    $region28: #{mapping_network_forward.1} parent=1 // pred_region
      %64 = dma.done [#allocation5], 128
    $region29: #{mapping_network_forward.1} parent=1 // pred_fallthru
      _
    // Predicated region
    $region30: #{mapping_network_forward.1} parent=1 // pred_check
      _
    $region31: #{mapping_network_forward.1} parent=1 // pred_check_branch
      %66 = sbr.rel (0) target = $region33
    $region32: #{mapping_network_forward.1} parent=1 // pred_region
      %67 = dma.done [#allocation5], 2304
    $region33: #{mapping_network_forward.1} parent=1 // pred_fallthru
      _
    // Predicated region
    $region34: #{mapping_network_forward.1} parent=1 // pred_check
      _
    $region35: #{mapping_network_forward.1} parent=1 // pred_check_branch
      %69 = sbr.rel (0) target = $region37
    $region36: #{mapping_network_forward.1} parent=1 // pred_region
      %70 = dma.done [#allocation8], 144
    $region37: #{mapping_network_forward.1} parent=1 // pred_fallthru
      _
    %v72 = vld [vmem:[#allocation2] sm:$0xff]
    %v73 = vmul.f32 %v72, %v72
    %vm74 = vcmask 261120
    %v75 = vsel %vm74, %v73, 0.0
    %76 = vadd.xlane.f32.xlu0 %v75
    %v77 = vpop.xlane.xlu0 %76
    %v78 = vrcp.pop 32.0
    %v79 = vmul.f32 %v77, %v78
    %v80 = vadd.f32 %v79, 1e-08
    %v81 = vrsqrt.pop %v80
    %v82 = vmul.f32 %v72, %v81
    %v83 = vld [vmem:[#allocation4] sm:$0xff]
    %v84 = vpack.c.bf16 %v83, %v83
    %v85 = vld [vmem:[%s2] sm:$0xf]
    %v86 = vld [vmem:[#allocation7] sm:$0x1]
    %v88 = vlaneseq
    %v89 = vshrl.u32 %v88, 7
    %v90 = vsub.s32 0, %v89
    %v91 = vrot.slane %v86, %v90
    %vm93 = vcmask 64512
    %v95 = vsel %vm93, %v84, 0
    %vm97 = vcmask 1043456
    %v99 = vsel %vm97, %v85, 0
    %101 = vmatprep.subr.bf16.mxu0 0
    %102 = vmatpush1.bf16.msra.mxu0 %v99
    %103 = vmatprep.subr.bf16.mxu0 0
    %104 = vmatpush1.bf16.msra.mxu0 0
    %105 = vmatprep.subr.bf16.mxu0 0
    %106 = vmatpush1.bf16.msra.mxu0 0
    %107 = vmatprep.subr.bf16.mxu0 0
    %108 = vmatpush1.bf16.msra.mxu0 0
    %109 = vmatprep.subr.bf16.mxu0 0
    %110 = vmatpush1.bf16.msra.mxu0 0
    %111 = vmatprep.subr.bf16.mxu0 0
    %112 = vmatpush1.bf16.msra.mxu0 0
    %113 = vmatprep.subr.bf16.mxu0 0
    %114 = vmatpush1.bf16.msra.mxu0 0
    %115 = vmatprep.subr.bf16.mxu0 0
    %116 = vmatpush1.bf16.msra.mxu0 0
    %117 = vmatprep.subr.bf16.mxu0 0
    %118 = vmatpush1.bf16.msra.mxu0 0
    %119 = vmatprep.subr.bf16.mxu0 0
    %120 = vmatpush1.bf16.msra.mxu0 0
    %121 = vmatprep.subr.bf16.mxu0 0
    %122 = vmatpush1.bf16.msra.mxu0 0
    %123 = vmatprep.subr.bf16.mxu0 0
    %124 = vmatpush1.bf16.msra.mxu0 0
    %125 = vmatprep.subr.bf16.mxu0 0
    %126 = vmatpush1.bf16.msra.mxu0 0
    %127 = vmatprep.subr.bf16.mxu0 0
    %128 = vmatpush1.bf16.msra.mxu0 0
    %129 = vmatprep.subr.bf16.mxu0 0
    %130 = vmatpush1.bf16.msra.mxu0 0
    %131 = vmatprep.subr.bf16.mxu0 0
    %132 = vmatpush1.bf16.msra.mxu0 0
    %133 = vmatprep.mubr.bf16.mxu0 0
    %134 = vmatmul.mubr.bf16.gmra.mrb[0].mxu0 %v95
    %v135 = vpop.f32.mrb[0].mxu0
    %v136 = vadd.f32 %v91, %v135
    %v137 = vpop.f32.mrb[0].mxu0
    %v138 = vpop.f32.mrb[0].mxu0
    %v139 = vpop.f32.mrb[0].mxu0
    %140 = vdwg.mxu0
    %v141 = vmul.f32 %v136, %v136
    %v142 = vsel %vm74, %v141, 0.0
    %143 = vadd.xlane.f32.xlu0 %v142
    %v144 = vpop.xlane.xlu0 %143
    %v145 = vmul.f32 %v144, %v78
    %v146 = vadd.f32 %v145, 1e-08
    %v147 = vrsqrt.pop %v146
    %v148 = vmul.f32 %v136, %v147
    %v149 = vpack.c.bf16 %v82, %v82
    %v150 = vld [vmem:[#allocation6] sm:$0xf]
    %v151 = vld [vmem:[#allocation6 + $0x4] sm:$0xf]
    %v152 = vld [vmem:[#allocation6 + $0x8] sm:$0xf]
    %v153 = vld [vmem:[#allocation6 + $0xc] sm:$0xf]
    %v154 = vpack.c.bf16 %v148, %v148
    %s155 = scalar_lea.vmem [#allocation6], 16
    %v156 = vld [vmem:[%s155] sm:$0xf]
    %v157 = vld [vmem:[%s155 + $0x4] sm:$0xf]
    %v158 = vld [vmem:[%s155 + $0x8] sm:$0xf]
    %v159 = vld [vmem:[%s155 + $0xc] sm:$0xf]
    %v164 = vunpack.c.l.b16 %v156
    %v165 = vunpack.c.l.b16 %v157
    %v166 = vunpack.c.l.b16 %v158
    %v167 = vunpack.c.l.b16 %v159
    %v168 = vpack.c.b16 %v165, %v164
    %v169 = vpack.c.b16 %v167, %v166
    %v173 = vsel %vm74, %v154, 0
    %175 = vmatprep.subr.bf16.mxu0 0
    %176 = vmatpush1.bf16.msra.mxu0 %v168
    %177 = vmatprep.subr.bf16.mxu0 0
    %178 = vmatpush1.bf16.msra.mxu0 %v169
    %179 = vmatprep.subr.bf16.mxu0 0
    %180 = vmatpush1.bf16.msra.mxu0 0
    %181 = vmatprep.subr.bf16.mxu0 0
    %182 = vmatpush1.bf16.msra.mxu0 0
    %183 = vmatprep.subr.bf16.mxu0 0
    %184 = vmatpush1.bf16.msra.mxu0 0
    %185 = vmatprep.subr.bf16.mxu0 0
    %186 = vmatpush1.bf16.msra.mxu0 0
    %187 = vmatprep.subr.bf16.mxu0 0
    %188 = vmatpush1.bf16.msra.mxu0 0
    %189 = vmatprep.subr.bf16.mxu0 0
    %190 = vmatpush1.bf16.msra.mxu0 0
    %191 = vmatprep.subr.bf16.mxu0 0
    %192 = vmatpush1.bf16.msra.mxu0 0
    %193 = vmatprep.subr.bf16.mxu0 0
    %194 = vmatpush1.bf16.msra.mxu0 0
    %195 = vmatprep.subr.bf16.mxu0 0
    %196 = vmatpush1.bf16.msra.mxu0 0
    %197 = vmatprep.subr.bf16.mxu0 0
    %198 = vmatpush1.bf16.msra.mxu0 0
    %199 = vmatprep.subr.bf16.mxu0 0
    %200 = vmatpush1.bf16.msra.mxu0 0
    %201 = vmatprep.subr.bf16.mxu0 0
    %202 = vmatpush1.bf16.msra.mxu0 0
    %203 = vmatprep.subr.bf16.mxu0 0
    %204 = vmatpush1.bf16.msra.mxu0 0
    %205 = vmatprep.subr.bf16.mxu0 0
    %206 = vmatpush1.bf16.msra.mxu0 0
    %207 = vmatprep.mubr.bf16.mxu0 0
    %208 = vmatmul.mubr.bf16.gmra.mrb[0].mxu0 %v173
    %v209 = vpop.f32.mrb[0].mxu0
    %v210 = vadd.f32 0.0, %v209
    %v211 = vpop.f32.mrb[0].mxu0
    %v212 = vpop.f32.mrb[0].mxu0
    %v213 = vpop.f32.mrb[0].mxu0
    %214 = vdwg.mxu0
    %v219 = vunpack.c.l.b16 %v150
    %v220 = vunpack.c.l.b16 %v151
    %v221 = vunpack.c.l.b16 %v152
    %v222 = vunpack.c.l.b16 %v153
    %v223 = vpack.c.b16 %v220, %v219
    %v224 = vpack.c.b16 %v222, %v221
    %v228 = vsel %vm74, %v149, 0
    %230 = vmatprep.subr.bf16.mxu0 0
    %231 = vmatpush1.bf16.msra.mxu0 %v223
    %232 = vmatprep.subr.bf16.mxu0 0
    %233 = vmatpush1.bf16.msra.mxu0 %v224
    %234 = vmatprep.subr.bf16.mxu0 0
    %235 = vmatpush1.bf16.msra.mxu0 0
    %236 = vmatprep.subr.bf16.mxu0 0
    %237 = vmatpush1.bf16.msra.mxu0 0
    %238 = vmatprep.subr.bf16.mxu0 0
    %239 = vmatpush1.bf16.msra.mxu0 0
    %240 = vmatprep.subr.bf16.mxu0 0
    %241 = vmatpush1.bf16.msra.mxu0 0
    %242 = vmatprep.subr.bf16.mxu0 0
    %243 = vmatpush1.bf16.msra.mxu0 0
    %244 = vmatprep.subr.bf16.mxu0 0
    %245 = vmatpush1.bf16.msra.mxu0 0
    %246 = vmatprep.subr.bf16.mxu0 0
    %247 = vmatpush1.bf16.msra.mxu0 0
    %248 = vmatprep.subr.bf16.mxu0 0
    %249 = vmatpush1.bf16.msra.mxu0 0
    %250 = vmatprep.subr.bf16.mxu0 0
    %251 = vmatpush1.bf16.msra.mxu0 0
    %252 = vmatprep.subr.bf16.mxu0 0
    %253 = vmatpush1.bf16.msra.mxu0 0
    %254 = vmatprep.subr.bf16.mxu0 0
    %255 = vmatpush1.bf16.msra.mxu0 0
    %256 = vmatprep.subr.bf16.mxu0 0
    %257 = vmatpush1.bf16.msra.mxu0 0
    %258 = vmatprep.subr.bf16.mxu0 0
    %259 = vmatpush1.bf16.msra.mxu0 0
    %260 = vmatprep.subr.bf16.mxu0 0
    %261 = vmatpush1.bf16.msra.mxu0 0
    %262 = vmatprep.mubr.bf16.mxu0 0
    %263 = vmatmul.mubr.bf16.gmra.mrb[0].mxu0 %v228
    %v264 = vpop.f32.mrb[0].mxu0
    %v265 = vadd.f32 %v210, %v264
    %v266 = vpop.f32.mrb[0].mxu0
    %v267 = vpop.f32.mrb[0].mxu0
    %v268 = vpop.f32.mrb[0].mxu0
    %269 = vdwg.mxu0
    %s270 = scalar_lea.vmem [#allocation7], 1
    %v271 = vld [vmem:[%s270] sm:$0x1]
    %v273 = vlaneseq
    %v274 = vshrl.u32 %v273, 7
    %v275 = vsub.s32 0, %v274
    %v276 = vrot.slane %v271, %v275
    %v278 = vadd.f32 %v265, %v276
    %vm279 = vcmp.ge.f32.partialorder %v278, 0.0
    %v280 = vmul.f32 %v278, 0.2
    %v281 = vsel %vm279, %v278, %v280
    %v282 = vmul.f32 %v281, 1.4142135
    %v283 = vpack.c.bf16 %v282, %v282
    %s284 = scalar_lea.vmem [#allocation6], 32
    %v285 = vld [vmem:[%s284] sm:$0xf]
    %v286 = vld [vmem:[%s284 + $0x4] sm:$0xf]
    %v287 = vld [vmem:[%s284 + $0x8] sm:$0xf]
    %v288 = vld [vmem:[%s284 + $0xc] sm:$0xf]
    %s289 = scalar_lea.vmem [#allocation7], 2
    %v290 = vld [vmem:[%s289] sm:$0x1]
    %v292 = vlaneseq
    %v293 = vshrl.u32 %v292, 7
    %v294 = vsub.s32 0, %v293
    %v295 = vrot.slane %v290, %v294
    %v301 = vunpack.c.l.b16 %v285
    %v302 = vunpack.c.l.b16 %v286
    %v303 = vunpack.c.l.b16 %v287
    %v304 = vunpack.c.l.b16 %v288
    %v305 = vpack.c.b16 %v302, %v301
    %v306 = vpack.c.b16 %v304, %v303
    %v310 = vsel %vm74, %v283, 0
    %312 = vmatprep.subr.bf16.mxu0 0
    %313 = vmatpush1.bf16.msra.mxu0 %v305
    %314 = vmatprep.subr.bf16.mxu0 0
    %315 = vmatpush1.bf16.msra.mxu0 %v306
    %316 = vmatprep.subr.bf16.mxu0 0
    %317 = vmatpush1.bf16.msra.mxu0 0
    %318 = vmatprep.subr.bf16.mxu0 0
    %319 = vmatpush1.bf16.msra.mxu0 0
    %320 = vmatprep.subr.bf16.mxu0 0
    %321 = vmatpush1.bf16.msra.mxu0 0
    %322 = vmatprep.subr.bf16.mxu0 0
    %323 = vmatpush1.bf16.msra.mxu0 0
    %324 = vmatprep.subr.bf16.mxu0 0
    %325 = vmatpush1.bf16.msra.mxu0 0
    %326 = vmatprep.subr.bf16.mxu0 0
    %327 = vmatpush1.bf16.msra.mxu0 0
    %328 = vmatprep.subr.bf16.mxu0 0
    %329 = vmatpush1.bf16.msra.mxu0 0
    %330 = vmatprep.subr.bf16.mxu0 0
    %331 = vmatpush1.bf16.msra.mxu0 0
    %332 = vmatprep.subr.bf16.mxu0 0
    %333 = vmatpush1.bf16.msra.mxu0 0
    %334 = vmatprep.subr.bf16.mxu0 0
    %335 = vmatpush1.bf16.msra.mxu0 0
    %336 = vmatprep.subr.bf16.mxu0 0
    %337 = vmatpush1.bf16.msra.mxu0 0
    %338 = vmatprep.subr.bf16.mxu0 0
    %339 = vmatpush1.bf16.msra.mxu0 0
    %340 = vmatprep.subr.bf16.mxu0 0
    %341 = vmatpush1.bf16.msra.mxu0 0
    %342 = vmatprep.subr.bf16.mxu0 0
    %343 = vmatpush1.bf16.msra.mxu0 0
    %344 = vmatprep.mubr.bf16.mxu0 0
    %345 = vmatmul.mubr.bf16.gmra.mrb[0].mxu0 %v310
    %v346 = vpop.f32.mrb[0].mxu0
    %v347 = vadd.f32 %v295, %v346
    %v348 = vpop.f32.mrb[0].mxu0
    %v349 = vpop.f32.mrb[0].mxu0
    %v350 = vpop.f32.mrb[0].mxu0
    %351 = vdwg.mxu0
    %vm352 = vcmp.ge.f32.partialorder %v347, 0.0
    %v353 = vmul.f32 %v347, 0.2
    %v354 = vsel %vm352, %v347, %v353
    %v355 = vmul.f32 %v354, 1.4142135
    %v356 = vpack.c.bf16 %v355, %v355
    %s357 = scalar_lea.vmem [#allocation6], 48
    %v358 = vld [vmem:[%s357] sm:$0xf]
    %v359 = vld [vmem:[%s357 + $0x4] sm:$0xf]
    %v360 = vld [vmem:[%s357 + $0x8] sm:$0xf]
    %v361 = vld [vmem:[%s357 + $0xc] sm:$0xf]
    %s362 = scalar_lea.vmem [#allocation7], 3
    %v363 = vld [vmem:[%s362] sm:$0x1]
    %v365 = vlaneseq
    %v366 = vshrl.u32 %v365, 7
    %v367 = vsub.s32 0, %v366
    %v368 = vrot.slane %v363, %v367
    %v374 = vunpack.c.l.b16 %v358
    %v375 = vunpack.c.l.b16 %v359
    %v376 = vunpack.c.l.b16 %v360
    %v377 = vunpack.c.l.b16 %v361
    %v378 = vpack.c.b16 %v375, %v374
    %v379 = vpack.c.b16 %v377, %v376
    %v383 = vsel %vm74, %v356, 0
    %385 = vmatprep.subr.bf16.mxu0 0
    %386 = vmatpush1.bf16.msra.mxu0 %v378
    %387 = vmatprep.subr.bf16.mxu0 0
    %388 = vmatpush1.bf16.msra.mxu0 %v379
    %389 = vmatprep.subr.bf16.mxu0 0
    %390 = vmatpush1.bf16.msra.mxu0 0
    %391 = vmatprep.subr.bf16.mxu0 0
    %392 = vmatpush1.bf16.msra.mxu0 0
    %393 = vmatprep.subr.bf16.mxu0 0
    %394 = vmatpush1.bf16.msra.mxu0 0
    %395 = vmatprep.subr.bf16.mxu0 0
    %396 = vmatpush1.bf16.msra.mxu0 0
    %397 = vmatprep.subr.bf16.mxu0 0
    %398 = vmatpush1.bf16.msra.mxu0 0
    %399 = vmatprep.subr.bf16.mxu0 0
    %400 = vmatpush1.bf16.msra.mxu0 0
    %401 = vmatprep.subr.bf16.mxu0 0
    %402 = vmatpush1.bf16.msra.mxu0 0
    %403 = vmatprep.subr.bf16.mxu0 0
    %404 = vmatpush1.bf16.msra.mxu0 0
    %405 = vmatprep.subr.bf16.mxu0 0
    %406 = vmatpush1.bf16.msra.mxu0 0
    %407 = vmatprep.subr.bf16.mxu0 0
    %408 = vmatpush1.bf16.msra.mxu0 0
    %409 = vmatprep.subr.bf16.mxu0 0
    %410 = vmatpush1.bf16.msra.mxu0 0
    %411 = vmatprep.subr.bf16.mxu0 0
    %412 = vmatpush1.bf16.msra.mxu0 0
    %413 = vmatprep.subr.bf16.mxu0 0
    %414 = vmatpush1.bf16.msra.mxu0 0
    %415 = vmatprep.subr.bf16.mxu0 0
    %416 = vmatpush1.bf16.msra.mxu0 0
    %417 = vmatprep.mubr.bf16.mxu0 0
    %418 = vmatmul.mubr.bf16.gmra.mrb[0].mxu0 %v383
    %v419 = vpop.f32.mrb[0].mxu0
    %v420 = vadd.f32 %v368, %v419
    %v421 = vpop.f32.mrb[0].mxu0
    %v422 = vpop.f32.mrb[0].mxu0
    %v423 = vpop.f32.mrb[0].mxu0
    %424 = vdwg.mxu0
    %vm425 = vcmp.ge.f32.partialorder %v420, 0.0
    %v426 = vmul.f32 %v420, 0.2
    %v427 = vsel %vm425, %v420, %v426
    %v428 = vmul.f32 %v427, 1.4142135
    %v429 = vpack.c.bf16 %v428, %v428
    %s430 = scalar_lea.vmem [#allocation6], 64
    %v431 = vld [vmem:[%s430] sm:$0xf]
    %v432 = vld [vmem:[%s430 + $0x4] sm:$0xf]
    %v433 = vld [vmem:[%s430 + $0x8] sm:$0xf]
    %v434 = vld [vmem:[%s430 + $0xc] sm:$0xf]
    %s435 = scalar_lea.vmem [#allocation7], 4
    %v436 = vld [vmem:[%s435] sm:$0x1]
    %v438 = vlaneseq
    %v439 = vshrl.u32 %v438, 7
    %v440 = vsub.s32 0, %v439
    %v441 = vrot.slane %v436, %v440
    %v447 = vunpack.c.l.b16 %v431
    %v448 = vunpack.c.l.b16 %v432
    %v449 = vunpack.c.l.b16 %v433
    %v450 = vunpack.c.l.b16 %v434
    %v451 = vpack.c.b16 %v448, %v447
    %v452 = vpack.c.b16 %v450, %v449
    %v456 = vsel %vm74, %v429, 0
    %458 = vmatprep.subr.bf16.mxu0 0
    %459 = vmatpush1.bf16.msra.mxu0 %v451
    %460 = vmatprep.subr.bf16.mxu0 0
    %461 = vmatpush1.bf16.msra.mxu0 %v452
    %462 = vmatprep.subr.bf16.mxu0 0
    %463 = vmatpush1.bf16.msra.mxu0 0
    %464 = vmatprep.subr.bf16.mxu0 0
    %465 = vmatpush1.bf16.msra.mxu0 0
    %466 = vmatprep.subr.bf16.mxu0 0
    %467 = vmatpush1.bf16.msra.mxu0 0
    %468 = vmatprep.subr.bf16.mxu0 0
    %469 = vmatpush1.bf16.msra.mxu0 0
    %470 = vmatprep.subr.bf16.mxu0 0
    %471 = vmatpush1.bf16.msra.mxu0 0
    %472 = vmatprep.subr.bf16.mxu0 0
    %473 = vmatpush1.bf16.msra.mxu0 0
    %474 = vmatprep.subr.bf16.mxu0 0
    %475 = vmatpush1.bf16.msra.mxu0 0
    %476 = vmatprep.subr.bf16.mxu0 0
    %477 = vmatpush1.bf16.msra.mxu0 0
    %478 = vmatprep.subr.bf16.mxu0 0
    %479 = vmatpush1.bf16.msra.mxu0 0
    %480 = vmatprep.subr.bf16.mxu0 0
    %481 = vmatpush1.bf16.msra.mxu0 0
    %482 = vmatprep.subr.bf16.mxu0 0
    %483 = vmatpush1.bf16.msra.mxu0 0
    %484 = vmatprep.subr.bf16.mxu0 0
    %485 = vmatpush1.bf16.msra.mxu0 0
    %486 = vmatprep.subr.bf16.mxu0 0
    %487 = vmatpush1.bf16.msra.mxu0 0
    %488 = vmatprep.subr.bf16.mxu0 0
    %489 = vmatpush1.bf16.msra.mxu0 0
    %490 = vmatprep.mubr.bf16.mxu0 0
    %491 = vmatmul.mubr.bf16.gmra.mrb[0].mxu0 %v456
    %v492 = vpop.f32.mrb[0].mxu0
    %v493 = vadd.f32 %v441, %v492
    %v494 = vpop.f32.mrb[0].mxu0
    %v495 = vpop.f32.mrb[0].mxu0
    %v496 = vpop.f32.mrb[0].mxu0
    %497 = vdwg.mxu0
    %vm498 = vcmp.ge.f32.partialorder %v493, 0.0
    %v499 = vmul.f32 %v493, 0.2
    %v500 = vsel %vm498, %v493, %v499
    %v501 = vmul.f32 %v500, 1.4142135
    %v502 = vpack.c.bf16 %v501, %v501
    %s503 = scalar_lea.vmem [#allocation6], 80
    %v504 = vld [vmem:[%s503] sm:$0xf]
    %v505 = vld [vmem:[%s503 + $0x4] sm:$0xf]
    %v506 = vld [vmem:[%s503 + $0x8] sm:$0xf]
    %v507 = vld [vmem:[%s503 + $0xc] sm:$0xf]
    %s508 = scalar_lea.vmem [#allocation7], 5
    %v509 = vld [vmem:[%s508] sm:$0x1]
    %v511 = vlaneseq
    %v512 = vshrl.u32 %v511, 7
    %v513 = vsub.s32 0, %v512
    %v514 = vrot.slane %v509, %v513
    %v520 = vunpack.c.l.b16 %v504
    %v521 = vunpack.c.l.b16 %v505
    %v522 = vunpack.c.l.b16 %v506
    %v523 = vunpack.c.l.b16 %v507
    %v524 = vpack.c.b16 %v521, %v520
    %v525 = vpack.c.b16 %v523, %v522
    %v529 = vsel %vm74, %v502, 0
    %531 = vmatprep.subr.bf16.mxu0 0
    %532 = vmatpush1.bf16.msra.mxu0 %v524
    %533 = vmatprep.subr.bf16.mxu0 0
    %534 = vmatpush1.bf16.msra.mxu0 %v525
    %535 = vmatprep.subr.bf16.mxu0 0
    %536 = vmatpush1.bf16.msra.mxu0 0
    %537 = vmatprep.subr.bf16.mxu0 0
    %538 = vmatpush1.bf16.msra.mxu0 0
    %539 = vmatprep.subr.bf16.mxu0 0
    %540 = vmatpush1.bf16.msra.mxu0 0
    %541 = vmatprep.subr.bf16.mxu0 0
    %542 = vmatpush1.bf16.msra.mxu0 0
    %543 = vmatprep.subr.bf16.mxu0 0
    %544 = vmatpush1.bf16.msra.mxu0 0
    %545 = vmatprep.subr.bf16.mxu0 0
    %546 = vmatpush1.bf16.msra.mxu0 0
    %547 = vmatprep.subr.bf16.mxu0 0
    %548 = vmatpush1.bf16.msra.mxu0 0
    %549 = vmatprep.subr.bf16.mxu0 0
    %550 = vmatpush1.bf16.msra.mxu0 0
    %551 = vmatprep.subr.bf16.mxu0 0
    %552 = vmatpush1.bf16.msra.mxu0 0
    %553 = vmatprep.subr.bf16.mxu0 0
    %554 = vmatpush1.bf16.msra.mxu0 0
    %555 = vmatprep.subr.bf16.mxu0 0
    %556 = vmatpush1.bf16.msra.mxu0 0
    %557 = vmatprep.subr.bf16.mxu0 0
    %558 = vmatpush1.bf16.msra.mxu0 0
    %559 = vmatprep.subr.bf16.mxu0 0
    %560 = vmatpush1.bf16.msra.mxu0 0
    %561 = vmatprep.subr.bf16.mxu0 0
    %562 = vmatpush1.bf16.msra.mxu0 0
    %563 = vmatprep.mubr.bf16.mxu0 0
    %564 = vmatmul.mubr.bf16.gmra.mrb[0].mxu0 %v529
    %v565 = vpop.f32.mrb[0].mxu0
    %v566 = vadd.f32 %v514, %v565
    %v567 = vpop.f32.mrb[0].mxu0
    %v568 = vpop.f32.mrb[0].mxu0
    %v569 = vpop.f32.mrb[0].mxu0
    %570 = vdwg.mxu0
    %vm571 = vcmp.ge.f32.partialorder %v566, 0.0
    %v572 = vmul.f32 %v566, 0.2
    %v573 = vsel %vm571, %v566, %v572
    %v574 = vmul.f32 %v573, 1.4142135
    %v575 = vpack.c.bf16 %v574, %v574
    %s576 = scalar_lea.vmem [#allocation6], 96
    %v577 = vld [vmem:[%s576] sm:$0xf]
    %v578 = vld [vmem:[%s576 + $0x4] sm:$0xf]
    %v579 = vld [vmem:[%s576 + $0x8] sm:$0xf]
    %v580 = vld [vmem:[%s576 + $0xc] sm:$0xf]
    %s581 = scalar_lea.vmem [#allocation7], 6
    %v582 = vld [vmem:[%s581] sm:$0x1]
    %v584 = vlaneseq
    %v585 = vshrl.u32 %v584, 7
    %v586 = vsub.s32 0, %v585
    %v587 = vrot.slane %v582, %v586
    %v593 = vunpack.c.l.b16 %v577
    %v594 = vunpack.c.l.b16 %v578
    %v595 = vunpack.c.l.b16 %v579
    %v596 = vunpack.c.l.b16 %v580
    %v597 = vpack.c.b16 %v594, %v593
    %v598 = vpack.c.b16 %v596, %v595
    %v602 = vsel %vm74, %v575, 0
    %604 = vmatprep.subr.bf16.mxu0 0
    %605 = vmatpush1.bf16.msra.mxu0 %v597
    %606 = vmatprep.subr.bf16.mxu0 0
    %607 = vmatpush1.bf16.msra.mxu0 %v598
    %608 = vmatprep.subr.bf16.mxu0 0
    %609 = vmatpush1.bf16.msra.mxu0 0
    %610 = vmatprep.subr.bf16.mxu0 0
    %611 = vmatpush1.bf16.msra.mxu0 0
    %612 = vmatprep.subr.bf16.mxu0 0
    %613 = vmatpush1.bf16.msra.mxu0 0
    %614 = vmatprep.subr.bf16.mxu0 0
    %615 = vmatpush1.bf16.msra.mxu0 0
    %616 = vmatprep.subr.bf16.mxu0 0
    %617 = vmatpush1.bf16.msra.mxu0 0
    %618 = vmatprep.subr.bf16.mxu0 0
    %619 = vmatpush1.bf16.msra.mxu0 0
    %620 = vmatprep.subr.bf16.mxu0 0
    %621 = vmatpush1.bf16.msra.mxu0 0
    %622 = vmatprep.subr.bf16.mxu0 0
    %623 = vmatpush1.bf16.msra.mxu0 0
    %624 = vmatprep.subr.bf16.mxu0 0
    %625 = vmatpush1.bf16.msra.mxu0 0
    %626 = vmatprep.subr.bf16.mxu0 0
    %627 = vmatpush1.bf16.msra.mxu0 0
    %628 = vmatprep.subr.bf16.mxu0 0
    %629 = vmatpush1.bf16.msra.mxu0 0
    %630 = vmatprep.subr.bf16.mxu0 0
    %631 = vmatpush1.bf16.msra.mxu0 0
    %632 = vmatprep.subr.bf16.mxu0 0
    %633 = vmatpush1.bf16.msra.mxu0 0
    %634 = vmatprep.subr.bf16.mxu0 0
    %635 = vmatpush1.bf16.msra.mxu0 0
    %636 = vmatprep.mubr.bf16.mxu0 0
    %637 = vmatmul.mubr.bf16.gmra.mrb[0].mxu0 %v602
    %v638 = vpop.f32.mrb[0].mxu0
    %v639 = vadd.f32 %v587, %v638
    %v640 = vpop.f32.mrb[0].mxu0
    %v641 = vpop.f32.mrb[0].mxu0
    %v642 = vpop.f32.mrb[0].mxu0
    %643 = vdwg.mxu0
    %vm644 = vcmp.ge.f32.partialorder %v639, 0.0
    %v645 = vmul.f32 %v639, 0.2
    %v646 = vsel %vm644, %v639, %v645
    %v647 = vmul.f32 %v646, 1.4142135
    %v648 = vpack.c.bf16 %v647, %v647
    %s649 = scalar_lea.vmem [#allocation6], 112
    %v650 = vld [vmem:[%s649] sm:$0xf]
    %v651 = vld [vmem:[%s649 + $0x4] sm:$0xf]
    %v652 = vld [vmem:[%s649 + $0x8] sm:$0xf]
    %v653 = vld [vmem:[%s649 + $0xc] sm:$0xf]
    %s654 = scalar_lea.vmem [#allocation7], 7
    %v655 = vld [vmem:[%s654] sm:$0x1]
    %v657 = vlaneseq
    %v658 = vshrl.u32 %v657, 7
    %v659 = vsub.s32 0, %v658
    %v660 = vrot.slane %v655, %v659
    %v666 = vunpack.c.l.b16 %v650
    %v667 = vunpack.c.l.b16 %v651
    %v668 = vunpack.c.l.b16 %v652
    %v669 = vunpack.c.l.b16 %v653
    %v670 = vpack.c.b16 %v667, %v666
    %v671 = vpack.c.b16 %v669, %v668
    %v675 = vsel %vm74, %v648, 0
    %677 = vmatprep.subr.bf16.mxu0 0
    %678 = vmatpush1.bf16.msra.mxu0 %v670
    %679 = vmatprep.subr.bf16.mxu0 0
    %680 = vmatpush1.bf16.msra.mxu0 %v671
    %681 = vmatprep.subr.bf16.mxu0 0
    %682 = vmatpush1.bf16.msra.mxu0 0
    %683 = vmatprep.subr.bf16.mxu0 0
    %684 = vmatpush1.bf16.msra.mxu0 0
    %685 = vmatprep.subr.bf16.mxu0 0
    %686 = vmatpush1.bf16.msra.mxu0 0
    %687 = vmatprep.subr.bf16.mxu0 0
    %688 = vmatpush1.bf16.msra.mxu0 0
    %689 = vmatprep.subr.bf16.mxu0 0
    %690 = vmatpush1.bf16.msra.mxu0 0
    %691 = vmatprep.subr.bf16.mxu0 0
    %692 = vmatpush1.bf16.msra.mxu0 0
    %693 = vmatprep.subr.bf16.mxu0 0
    %694 = vmatpush1.bf16.msra.mxu0 0
    %695 = vmatprep.subr.bf16.mxu0 0
    %696 = vmatpush1.bf16.msra.mxu0 0
    %697 = vmatprep.subr.bf16.mxu0 0
    %698 = vmatpush1.bf16.msra.mxu0 0
    %699 = vmatprep.subr.bf16.mxu0 0
    %700 = vmatpush1.bf16.msra.mxu0 0
    %701 = vmatprep.subr.bf16.mxu0 0
    %702 = vmatpush1.bf16.msra.mxu0 0
    %703 = vmatprep.subr.bf16.mxu0 0
    %704 = vmatpush1.bf16.msra.mxu0 0
    %705 = vmatprep.subr.bf16.mxu0 0
    %706 = vmatpush1.bf16.msra.mxu0 0
    %707 = vmatprep.subr.bf16.mxu0 0
    %708 = vmatpush1.bf16.msra.mxu0 0
    %709 = vmatprep.mubr.bf16.mxu0 0
    %710 = vmatmul.mubr.bf16.gmra.mrb[0].mxu0 %v675
    %v711 = vpop.f32.mrb[0].mxu0
    %v712 = vadd.f32 %v660, %v711
    %v713 = vpop.f32.mrb[0].mxu0
    %v714 = vpop.f32.mrb[0].mxu0
    %v715 = vpop.f32.mrb[0].mxu0
    %716 = vdwg.mxu0
    %vm717 = vcmp.ge.f32.partialorder %v712, 0.0
    %v718 = vmul.f32 %v712, 0.2
    %v719 = vsel %vm717, %v712, %v718
    %v720 = vmul.f32 %v719, 1.4142135
    %v721 = vpack.c.bf16 %v720, %v720
    %s722 = scalar_lea.vmem [#allocation6], 128
    %v723 = vld [vmem:[%s722] sm:$0xf]
    %v724 = vld [vmem:[%s722 + $0x4] sm:$0xf]
    %v725 = vld [vmem:[%s722 + $0x8] sm:$0xf]
    %v726 = vld [vmem:[%s722 + $0xc] sm:$0xf]
    %s727 = scalar_lea.vmem [#allocation7], 8
    %v728 = vld [vmem:[%s727] sm:$0x1]
    %v730 = vlaneseq
    %v731 = vshrl.u32 %v730, 7
    %v732 = vsub.s32 0, %v731
    %v733 = vrot.slane %v728, %v732
    %v739 = vunpack.c.l.b16 %v723
    %v740 = vunpack.c.l.b16 %v724
    %v741 = vunpack.c.l.b16 %v725
    %v742 = vunpack.c.l.b16 %v726
    %v743 = vpack.c.b16 %v740, %v739
    %v744 = vpack.c.b16 %v742, %v741
    %v748 = vsel %vm74, %v721, 0
    %750 = vmatprep.subr.bf16.mxu0 0
    %751 = vmatpush1.bf16.msra.mxu0 %v743
    %752 = vmatprep.subr.bf16.mxu0 0
    %753 = vmatpush1.bf16.msra.mxu0 %v744
    %754 = vmatprep.subr.bf16.mxu0 0
    %755 = vmatpush1.bf16.msra.mxu0 0
    %756 = vmatprep.subr.bf16.mxu0 0
    %757 = vmatpush1.bf16.msra.mxu0 0
    %758 = vmatprep.subr.bf16.mxu0 0
    %759 = vmatpush1.bf16.msra.mxu0 0
    %760 = vmatprep.subr.bf16.mxu0 0
    %761 = vmatpush1.bf16.msra.mxu0 0
    %762 = vmatprep.subr.bf16.mxu0 0
    %763 = vmatpush1.bf16.msra.mxu0 0
    %764 = vmatprep.subr.bf16.mxu0 0
    %765 = vmatpush1.bf16.msra.mxu0 0
    %766 = vmatprep.subr.bf16.mxu0 0
    %767 = vmatpush1.bf16.msra.mxu0 0
    %768 = vmatprep.subr.bf16.mxu0 0
    %769 = vmatpush1.bf16.msra.mxu0 0
    %770 = vmatprep.subr.bf16.mxu0 0
    %771 = vmatpush1.bf16.msra.mxu0 0
    %772 = vmatprep.subr.bf16.mxu0 0
    %773 = vmatpush1.bf16.msra.mxu0 0
    %774 = vmatprep.subr.bf16.mxu0 0
    %775 = vmatpush1.bf16.msra.mxu0 0
    %776 = vmatprep.subr.bf16.mxu0 0
    %777 = vmatpush1.bf16.msra.mxu0 0
    %778 = vmatprep.subr.bf16.mxu0 0
    %779 = vmatpush1.bf16.msra.mxu0 0
    %780 = vmatprep.subr.bf16.mxu0 0
    %781 = vmatpush1.bf16.msra.mxu0 0
    %782 = vmatprep.mubr.bf16.mxu0 0
    %783 = vmatmul.mubr.bf16.gmra.mrb[0].mxu0 %v748
    %v784 = vpop.f32.mrb[0].mxu0
    %v785 = vadd.f32 %v733, %v784
    %v786 = vpop.f32.mrb[0].mxu0
    %v787 = vpop.f32.mrb[0].mxu0
    %v788 = vpop.f32.mrb[0].mxu0
    %789 = vdwg.mxu0
    %vm790 = vcmp.ge.f32.partialorder %v785, 0.0
    %v791 = vmul.f32 %v785, 0.2
    %v792 = vsel %vm790, %v785, %v791
    %v793 = vmul.f32 %v792, 1.4142135
    %795 = vrot.lane.b32.xlu0 %v793, 32
    %v796 = vpop.permute.xlu0 %795
    %798 = vrot.lane.b32.xlu0 %v793, 64
    %v799 = vpop.permute.xlu0 %798
    %801 = vrot.lane.b32.xlu0 %v793, 96
    %v802 = vpop.permute.xlu0 %801
    %v804 = vsel %vm74, %v793, %v796
    %vm805 = vcmask 523264
    %v806 = vsel %vm805, %v804, %v799
    %vm807 = vcmask 785408
    %v808 = vsel %vm807, %v806, %v802
    %809 = vst [vmem:[%s5] sm:$0xff] %v808
    // Predicated region
    $region38: #{mapping_network_forward.1} parent=1 // pred_check
      _
    $region39: #{mapping_network_forward.1} parent=1 // pred_check_branch
      %811 = sbr.rel (0) target = $region41
    $region40: #{mapping_network_forward.1} parent=1 // pred_region
      _
    $region41: #{mapping_network_forward.1} parent=1 // pred_fallthru
      _
    // Predicated region
    $region42: #{mapping_network_forward.1} parent=1 // pred_check
      _
    $region43: #{mapping_network_forward.1} parent=1 // pred_check_branch
      %813 = sbr.rel (0) target = $region45
    $region44: #{mapping_network_forward.1} parent=1 // pred_region
      _
    $region45: #{mapping_network_forward.1} parent=1 // pred_fallthru
      _
    %814 = vsyncpa [#allocation3], 1
    %815 = vsyncpa [#allocation5], 1
    %816 = vsyncpa [#allocation8], 1

</llo_original>
